<compile_context>
chip_gen: v5e
topology: v5e:2x2
jax: 0.10.0
libtpu: 0.0.40
codegen_flags: <defaults>
</compile_context>

<pallas_src>
import jax
import jax.numpy as jnp
from jax.experimental import pallas as pl
from jax.experimental.pallas import tpu as pltpu


# ---------------------------------------------------------------------------
# Hardware query helpers (generation-aware VMEM budgeting).
# ---------------------------------------------------------------------------
def _tpu_vmem_capacity_bytes():
    try:
        return int(pltpu.get_tpu_info().vmem_capacity_bytes)
    except Exception:
        return 128 << 20  # conservative fallback: assume v5e/v6e-class VMEM


def _gen_limits():
    """VMEM budget / cap and TensorCore-count heuristics per chip generation."""
    cap = _tpu_vmem_capacity_bytes()
    if cap <= (96 << 20):
        # v7x-class: 64 MiB VMEM per TC, 2 TCs per chip.
        return {"two_core": True, "budget": 24 << 20,
                "budget_cap": 28 << 20, "limit_cap": 32 << 20}
    # v5e / v6e: 128 MiB VMEM, single TensorCore.
    return {"two_core": False, "budget": 40 << 20,
            "budget_cap": 48 << 20, "limit_cap": 48 << 20}


# ---------------------------------------------------------------------------
# Pallas kernels.
# ---------------------------------------------------------------------------
def _mmtm_kernel(v_ref, s_ref,
                 wsv_ref, wss_ref, bsq_ref,
                 wv_ref, bv_ref,
                 ws_ref, bs_ref,
                 ov_ref, os_ref):
    """Fused MMTM: one grid step handles a block of `bb` batch elements."""
    v = v_ref[...]                                        # (bb, Cv, Nvp)  I/O dtype
    s = s_ref[...]                                        # (bb, Cs, Nsp)

    # --- squeeze: per-(batch, channel) sums with f32 accumulation.  The 1/N
    #     mean scaling is folded into the squeeze weights, so the zero lane
    #     padding used for N < 128 cannot perturb the sums.
    # TODO(synk): on v7x the read-path upcast + VALU/XLU reduce could move to
    #     the MXU via a ones-matvec (jnp.dot(v.reshape(bb*C, N), ones[:, None]));
    #     the (bb*C, 1) -> (bb, C) result relayout is the lowering risk that
    #     keeps this on the (still HBM-bound) vector path for now.
    sum_v = jnp.sum(v.astype(jnp.float32), axis=-1)       # (bb, Cv)
    sum_s = jnp.sum(s.astype(jnp.float32), axis=-1)       # (bb, Cs)

    # --- fc_squeeze (weights pre-transposed + pre-scaled by 1/N) + ReLU ---
    exc = (jnp.dot(sum_v, wsv_ref[...], preferred_element_type=jnp.float32)
           + jnp.dot(sum_s, wss_ref[...], preferred_element_type=jnp.float32)
           + bsq_ref[...])                                # (bb, Do)
    exc = jnp.maximum(exc, 0.0)

    # --- fc_visual / fc_skeleton + sigmoid gates (f32 math, MXU + EUP) ---
    gate_v = jax.nn.sigmoid(
        jnp.dot(exc, wv_ref[...], preferred_element_type=jnp.float32)
        + bv_ref[...])                                    # (bb, Cv)
    gate_s = jax.nn.sigmoid(
        jnp.dot(exc, ws_ref[...], preferred_element_type=jnp.float32)
        + bs_ref[...])                                    # (bb, Cs)

    # --- broadcast the per-channel gate over the lane (spatial) axis and
    #     multiply in the native I/O dtype: one gate downcast per
    #     (batch, channel), no full-tile f32 temporaries on the write path.
    ov_ref[...] = (v * gate_v[:, :, None].astype(v.dtype)).astype(ov_ref.dtype)
    os_ref[...] = (s * gate_s[:, :, None].astype(s.dtype)).astype(os_ref.dtype)


def _scale_kernel(g_ref, x_ref, o_ref):
    """Two-phase fallback, phase 2: broadcast per-channel gate over an N tile."""
    x = x_ref[...]                                        # (1, C, tn)
    o_ref[...] = (x * g_ref[...].astype(x.dtype)).astype(o_ref.dtype)


# ---------------------------------------------------------------------------
# Wrapper helpers.
# ---------------------------------------------------------------------------
def _pad_lanes_if_narrow(x):
    """Zero-pad the last (lane) axis up to 128 only when it is narrower than
    one full lane (N < 128).  For N >= 128 the BlockSpec simply uses the full
    array extent (legal even when not a multiple of 128); skipping the
    jnp.pad + post-slice avoids two extra full HBM passes over the tensor."""
    n = x.shape[-1]
    if n >= 128:
        return x, n
    # TODO(synk): when N < 128 and (C * N) % 128 == 0 a free contiguous
    # reshape to (B, C*N//128, 128) would avoid the pad entirely, but the
    # per-channel gate broadcast no longer maps cleanly onto that layout.
    widths = [(0, 0)] * (x.ndim - 1) + [(0, 128 - n)]
    return jnp.pad(x, widths), 128


def _pick_batch_block(batch, per_batch_vmem_bytes, budget_bytes, two_core):
    """Largest batch block that fits the VMEM budget and divides B.  Only on
    2-TensorCore chips (v7x) is bb additionally capped at B//2 so the
    'parallel' grid axis has work for both cores; on single-TC chips bigger
    blocks just mean fewer grid steps and larger DMA bursts."""
    bb = max(1, min(batch, budget_bytes // max(per_batch_vmem_bytes, 1)))
    if two_core and batch >= 2:
        bb = min(bb, max(1, batch // 2))
    while batch % bb:
        bb -= 1
    return bb


def _scaled_copy(x, gates, budget, limit_cap):
    """Pallas broadcast-scale pass, tiled over the spatial (lane) axis."""
    B, C, N = x.shape
    isz = jnp.dtype(x.dtype).itemsize
    # Per grid step: double-buffered in + out tiles + native-dtype product temp.
    tn = int(budget // max(5 * C * isz, 1))
    if tn >= N:
        tn = N                                            # full extent (legal)
    else:
        tn = max(128, (tn // 128) * 128)                  # lane-aligned tile
    grid = (B, pl.cdiv(N, tn))
    vmem_limit = int(min(max(5 * C * tn * isz + (1 << 20), 4 << 20), limit_cap))
    return pl.pallas_call(
        _scale_kernel,
        out_shape=jax.ShapeDtypeStruct((B, C, N), x.dtype),
        grid_spec=pltpu.PrefetchScalarGridSpec(
            num_scalar_prefetch=0,
            grid=grid,
            in_specs=[
                pl.BlockSpec((1, C, 1), lambda b, n: (b, 0, 0)),
                pl.BlockSpec((1, C, tn), lambda b, n: (b, 0, n)),
            ],
            out_specs=pl.BlockSpec((1, C, tn), lambda b, n: (b, 0, n)),
        ),
        compiler_params=pltpu.CompilerParams(
            dimension_semantics=("parallel", "parallel"),
            vmem_limit_bytes=vmem_limit),
    )(gates[:, :, None].astype(jnp.float32), x)


def _mmtm_two_phase(v_flat, s_flat, wsv_t, wss_t, b_sq_r, wv_t, b_v_r,
                    ws_t, b_s_r, budget, limit_cap):
    """Fallback when one batch element's (C, N) block exceeds the VMEM budget:
    phase 1 computes the gates with XLA (reads each tensor once), phase 2 is a
    Pallas scale pass tiled over N (reads + writes each tensor once)."""
    hp = jax.lax.Precision.HIGHEST
    sum_v = jnp.sum(v_flat.astype(jnp.float32), axis=-1)
    sum_s = jnp.sum(s_flat.astype(jnp.float32), axis=-1)
    exc = jnp.maximum(
        jnp.dot(sum_v, wsv_t, precision=hp)
        + jnp.dot(sum_s, wss_t, precision=hp) + b_sq_r, 0.0)
    gate_v = jax.nn.sigmoid(jnp.dot(exc, wv_t, precision=hp) + b_v_r)
    gate_s = jax.nn.sigmoid(jnp.dot(exc, ws_t, precision=hp) + b_s_r)
    out_v = _scaled_copy(v_flat, gate_v, budget, limit_cap)
    out_s = _scaled_copy(s_flat, gate_s, budget, limit_cap)
    return out_v, out_s


# ---------------------------------------------------------------------------
# Wrapper: flatten spatial dims, (maybe) pad lanes, call pallas_call, reshape.
# ---------------------------------------------------------------------------
def mmtm_forward(visual, skeleton, params, *, vmem_budget_bytes=None):
    orig_v_shape, orig_s_shape = visual.shape, skeleton.shape
    B, Cv = visual.shape[:2]
    Cs = skeleton.shape[1]

    # Keep the model's native dtype for I/O (no forced f32 pass over HBM).
    v_flat = visual.reshape(B, Cv, -1)
    s_flat = skeleton.reshape(B, Cs, -1)
    Nv, Ns = v_flat.shape[-1], s_flat.shape[-1]

    # --- weights: split fc_squeeze into visual/skeleton column blocks, fold
    #     the 1/N mean scaling into them, pre-transpose for row-major matmuls.
    w_sq = params["w_sq"].astype(jnp.float32)
    b_sq = params["b_sq"].astype(jnp.float32)
    w_v = params["w_v"].astype(jnp.float32)
    b_v = params["b_v"].astype(jnp.float32)
    w_s = params["w_s"].astype(jnp.float32)
    b_s = params["b_s"].astype(jnp.float32)
    dim_out = w_sq.shape[0]

    wsv_t = (w_sq[:, :Cv] * (1.0 / Nv)).T                 # (Cv, Do)
    wss_t = (w_sq[:, Cv:] * (1.0 / Ns)).T                 # (Cs, Do)
    b_sq_r = b_sq.reshape(1, dim_out)
    wv_t = w_v.T                                          # (Do, Cv)
    b_v_r = b_v.reshape(1, Cv)
    ws_t = w_s.T                                          # (Do, Cs)
    b_s_r = b_s.reshape(1, Cs)

    # --- generation-aware VMEM budget / limits ---
    lim = _gen_limits()
    if vmem_budget_bytes is None:
        budget = lim["budget"]
    else:
        budget = max(1, min(int(vmem_budget_bytes), lim["budget_cap"]))

    # --- lane padding only for narrow (< 128) spatial extents ---
    v_k, Nvp = _pad_lanes_if_narrow(v_flat)
    s_k, Nsp = _pad_lanes_if_narrow(s_flat)

    # --- VMEM accounting (incl. in-kernel temporaries) ---
    isz_v = jnp.dtype(v_k.dtype).itemsize
    isz_s = jnp.dtype(s_k.dtype).itemsize
    per_batch_io = Cv * Nvp * isz_v + Cs * Nsp * isz_s
    per_batch_f32 = ((Cv * Nvp * 4) if isz_v < 4 else 0) + \
                    ((Cs * Nsp * 4) if isz_s < 4 else 0)
    # 2x double-buffered inputs + 2x double-buffered outputs + product temps
    # (native dtype) + read-path f32 cast for sub-32-bit inputs.
    per_batch_vmem = 5 * per_batch_io + per_batch_f32

    if per_batch_vmem > budget:
        # Two-phase N-tiled fallback (whole-tensor residency impossible).
        out_v, out_s = _mmtm_two_phase(v_flat, s_flat, wsv_t, wss_t, b_sq_r,
                                       wv_t, b_v_r, ws_t, b_s_r,
                                       budget, lim["limit_cap"])
        return out_v.reshape(orig_v_shape), out_s.reshape(orig_s_shape)

    bb = _pick_batch_block(B, per_batch_vmem, budget, lim["two_core"])
    grid = (B // bb,)

    weight_bytes = 4 * (dim_out * (Cv + Cs) + dim_out
                        + dim_out * Cv + Cv + dim_out * Cs + Cs)
    vmem_limit = int(min(max(bb * per_batch_vmem + 2 * weight_bytes + (2 << 20),
                             8 << 20), lim["limit_cap"]))

    # --- advisory cost estimate: this kernel is HBM-bandwidth bound.
    elems = B * (Cv * Nvp + Cs * Nsp)
    bytes_accessed = int(B * per_batch_io * 2 + weight_bytes)
    flops = int(3 * elems + 4 * B * dim_out * (Cv + Cs))
    transcendentals = int(B * (Cv + Cs))

    const2 = lambda b: (0, 0)  # noqa: E731  (replicated weight operands)

    out_v, out_s = pl.pallas_call(
        _mmtm_kernel,
        out_shape=(
            jax.ShapeDtypeStruct((B, Cv, Nvp), v_k.dtype),
            jax.ShapeDtypeStruct((B, Cs, Nsp), s_k.dtype),
        ),
        grid_spec=pltpu.PrefetchScalarGridSpec(
            num_scalar_prefetch=0,
            grid=grid,
            in_specs=[
                pl.BlockSpec((bb, Cv, Nvp), lambda b: (b, 0, 0)),
                pl.BlockSpec((bb, Cs, Nsp), lambda b: (b, 0, 0)),
                pl.BlockSpec((Cv, dim_out), const2),
                pl.BlockSpec((Cs, dim_out), const2),
                pl.BlockSpec((1, dim_out), const2),
                pl.BlockSpec((dim_out, Cv), const2),
                pl.BlockSpec((1, Cv), const2),
                pl.BlockSpec((dim_out, Cs), const2),
                pl.BlockSpec((1, Cs), const2),
            ],
            out_specs=[
                pl.BlockSpec((bb, Cv, Nvp), lambda b: (b, 0, 0)),
                pl.BlockSpec((bb, Cs, Nsp), lambda b: (b, 0, 0)),
            ],
        ),
        compiler_params=pltpu.CompilerParams(
            dimension_semantics=("parallel",),
            vmem_limit_bytes=vmem_limit),
        cost_estimate=pl.CostEstimate(
            flops=flops,
            transcendentals=transcendentals,
            bytes_accessed=bytes_accessed),
        # TODO(synk): consider pipeline_mode=pl.Buffered(3) on the big I/O
        # BlockSpecs on v7x once the footprint is confirmed well under 32 MiB.
    )(v_k, s_k, wsv_t, wss_t, b_sq_r, wv_t, b_v_r, ws_t, b_s_r)

    if Nvp != Nv:
        out_v = out_v[..., :Nv]
    if Nsp != Ns:
        out_s = out_s[..., :Ns]
    return out_v.reshape(orig_v_shape), out_s.reshape(orig_s_shape)


# ---------------------------------------------------------------------------
# Pure-JAX reference (mirrors the PyTorch MMTM.forward exactly, in f32).
# ---------------------------------------------------------------------------
def mmtm_reference(visual, skeleton, params):
    B, Cv = visual.shape[:2]
    Cs = skeleton.shape[1]
    sv = visual.reshape(B, Cv, -1).mean(axis=-1)
    ss = skeleton.reshape(B, Cs, -1).mean(axis=-1)
    squeeze = jnp.concatenate([sv, ss], axis=1)
    exc = jnp.maximum(squeeze @ params["w_sq"].T + params["b_sq"], 0.0)
    gate_v = jax.nn.sigmoid(exc @ params["w_v"].T + params["b_v"])
    gate_s = jax.nn.sigmoid(exc @ params["w_s"].T + params["b_s"])
    gate_v = gate_v.reshape(gate_v.shape + (1,) * (visual.ndim - 2))
    gate_s = gate_s.reshape(gate_s.shape + (1,) * (skeleton.ndim - 2))
    return visual * gate_v, skeleton * gate_s


# ---------------------------------------------------------------------------
# Deterministic parameter init (matches nn.Linear shapes / init scheme).
# ---------------------------------------------------------------------------
def _init_linear(key, out_dim, in_dim):
    kw, kb = jax.random.split(key)
    bound = 1.0 / jnp.sqrt(jnp.float32(in_dim))
    w = jax.random.uniform(kw, (out_dim, in_dim), jnp.float32, -bound, bound)
    b = jax.random.uniform(kb, (out_dim,), jnp.float32, -bound, bound)
    return w, b


def init_mmtm_params(key, dim_visual, dim_skeleton, ratio):
    dim = dim_visual + dim_skeleton
    dim_out = int(2 * dim / ratio)
    k1, k2, k3 = jax.random.split(key, 3)
    w_sq, b_sq = _init_linear(k1, dim_out, dim)
    w_v, b_v = _init_linear(k2, dim_visual, dim_out)
    w_s, b_s = _init_linear(k3, dim_skeleton, dim_out)
    return {"w_sq": w_sq, "b_sq": b_sq,
            "w_v": w_v, "b_v": b_v,
            "w_s": w_s, "b_s": b_s}


# TODO(synk): ResNet / visual_model / TMC / ETMC / FRM / FFM bodies are not
# provided in the source module, so the surrounding fusion_model.forward glue
# (and its CrossEntropyLoss) is not reproduced; only the MMTM fusion block
# (the fully defined dependent class) is implemented as a Pallas kernel.

if __name__ == "__main__":
    key = jax.random.PRNGKey(0)
    k_p, k_v, k_s, k_s2 = jax.random.split(key, 4)

    # Analogous to mmtm_64 usage: radar feature (B, 64, 1, H, W),
    # visual feature (B, 64, 2, S, T) -- scaled down to small test shapes.
    B, C = 2, 64
    visual = jax.random.normal(k_v, (B, C, 1, 16, 16), jnp.float32)   # N = 256
    skeleton = jax.random.normal(k_s, (B, C, 2, 8, 9), jnp.float32)   # N = 144 (>=128, unpadded)

    params = init_mmtm_params(k_p, dim_visual=C, dim_skeleton=C, ratio=4)

    # --- f32 I/O path (fused single-pass kernel, no pad / no post-slice) ---
    out_v, out_s = jax.block_until_ready(mmtm_forward(visual, skeleton, params))
    ref_v, ref_s = mmtm_reference(visual, skeleton, params)
    assert out_v.shape == visual.shape and out_s.shape == skeleton.shape
    assert out_v.dtype == visual.dtype and out_s.dtype == skeleton.dtype
    assert jnp.allclose(out_v, ref_v, atol=2e-5, rtol=2e-5)
    assert jnp.allclose(out_s, ref_s, atol=2e-5, rtol=2e-5)

    # --- bf16 I/O path with a narrow (< 128) skeleton extent (pad path) ---
    skeleton_small = jax.random.normal(k_s2, (B, C, 2, 8, 4), jnp.float32)  # N = 64
    v_bf = visual.astype(jnp.bfloat16)
    s_bf = skeleton_small.astype(jnp.bfloat16)
    ov_bf, os_bf = jax.block_until_ready(mmtm_forward(v_bf, s_bf, params))
    assert ov_bf.dtype == jnp.bfloat16 and os_bf.dtype == jnp.bfloat16
    ref_vb, ref_sb = mmtm_reference(v_bf.astype(jnp.float32),
                                    s_bf.astype(jnp.float32), params)
    assert jnp.allclose(ov_bf.astype(jnp.float32), ref_vb, atol=2e-2, rtol=2e-2)
    assert jnp.allclose(os_bf.astype(jnp.float32), ref_sb, atol=2e-2, rtol=2e-2)

    # --- two-phase (N-tiled) fallback path, forced via a tiny VMEM budget ---
    fv, fs = jax.block_until_ready(
        mmtm_forward(visual, skeleton, params, vmem_budget_bytes=256 << 10))
    assert fv.shape == visual.shape and fs.shape == skeleton.shape
    assert jnp.allclose(fv, ref_v, atol=2e-5, rtol=2e-5)
    assert jnp.allclose(fs, ref_s, atol=2e-5, rtol=2e-5)

    print("KERNEL_OK")
</pallas_src>

<mosaic_0001>
module attributes {stable_mosaic.version = 11 : i64} {
  func.func @_mmtm_kernel(%arg0: i32, %arg1: memref<2x64x256xf32, #tpu.memory_space<vmem>>, %arg2: memref<2x64x144xf32, #tpu.memory_space<vmem>>, %arg3: memref<64x64xf32, #tpu.memory_space<vmem>>, %arg4: memref<64x64xf32, #tpu.memory_space<vmem>>, %arg5: memref<1x64xf32, #tpu.memory_space<vmem>>, %arg6: memref<64x64xf32, #tpu.memory_space<vmem>>, %arg7: memref<1x64xf32, #tpu.memory_space<vmem>>, %arg8: memref<64x64xf32, #tpu.memory_space<vmem>>, %arg9: memref<1x64xf32, #tpu.memory_space<vmem>>, %arg10: memref<2x64x256xf32, #tpu.memory_space<vmem>>, %arg11: memref<2x64x144xf32, #tpu.memory_space<vmem>>) attributes {dimension_semantics = [#tpu.dimension_semantics<parallel>], iteration_bounds = array<i64: 1>, scalar_prefetch = 0 : i64, scratch_operands = 0 : i64, tpu.core_type = #tpu.core_type<tc>, window_params = [{transform_indices = @transform_0, window_bounds = array<i64: 2, 64, 256>}, {transform_indices = @transform_1, window_bounds = array<i64: 2, 64, 144>}, {pipeline_mode = #tpu.pipeline_mode<synchronous>, transform_indices = @transform_2, window_bounds = array<i64: 64, 64>}, {pipeline_mode = #tpu.pipeline_mode<synchronous>, transform_indices = @transform_3, window_bounds = array<i64: 64, 64>}, {pipeline_mode = #tpu.pipeline_mode<synchronous>, transform_indices = @transform_4, window_bounds = array<i64: 1, 64>}, {pipeline_mode = #tpu.pipeline_mode<synchronous>, transform_indices = @transform_5, window_bounds = array<i64: 64, 64>}, {pipeline_mode = #tpu.pipeline_mode<synchronous>, transform_indices = @transform_6, window_bounds = array<i64: 1, 64>}, {pipeline_mode = #tpu.pipeline_mode<synchronous>, transform_indices = @transform_7, window_bounds = array<i64: 64, 64>}, {pipeline_mode = #tpu.pipeline_mode<synchronous>, transform_indices = @transform_8, window_bounds = array<i64: 1, 64>}, {transform_indices = @transform_9, window_bounds = array<i64: 2, 64, 256>}, {transform_indices = @transform_10, window_bounds = array<i64: 2, 64, 144>}]} {
    %c0 = arith.constant 0 : index
    %c0_0 = arith.constant 0 : index
    %c0_1 = arith.constant 0 : index
    %0 = vector.load %arg1[%c0, %c0_0, %c0_1] : memref<2x64x256xf32, #tpu.memory_space<vmem>>, vector<2x64x256xf32>
    %c0_2 = arith.constant 0 : index
    %c0_3 = arith.constant 0 : index
    %c0_4 = arith.constant 0 : index
    %1 = vector.load %arg2[%c0_2, %c0_3, %c0_4] : memref<2x64x144xf32, #tpu.memory_space<vmem>>, vector<2x64x144xf32>
    %cst = arith.constant dense<0.000000e+00> : vector<2x64xf32>
    %2 = vector.multi_reduction <add>, %0, %cst [2] : vector<2x64x256xf32> to vector<2x64xf32>
    %cst_5 = arith.constant dense<0.000000e+00> : vector<2x64xf32>
    %3 = vector.multi_reduction <add>, %1, %cst_5 [2] : vector<2x64x144xf32> to vector<2x64xf32>
    %c0_6 = arith.constant 0 : index
    %c0_7 = arith.constant 0 : index
    %4 = vector.load %arg3[%c0_6, %c0_7] : memref<64x64xf32, #tpu.memory_space<vmem>>, vector<64x64xf32>
    %cst_8 = arith.constant dense<0.000000e+00> : vector<2x64xf32>
    %5 = tpu.matmul %2, %4, %cst_8 {dimension_numbers = #tpu.dot_dimension_numbers<[1], [0], [0], [1], [0, 0, 1, 1], [], []>} : vector<2x64xf32>, vector<64x64xf32>, vector<2x64xf32> -> vector<2x64xf32>
    %c0_9 = arith.constant 0 : index
    %c0_10 = arith.constant 0 : index
    %6 = vector.load %arg4[%c0_9, %c0_10] : memref<64x64xf32, #tpu.memory_space<vmem>>, vector<64x64xf32>
    %cst_11 = arith.constant dense<0.000000e+00> : vector<2x64xf32>
    %7 = tpu.matmul %3, %6, %cst_11 {dimension_numbers = #tpu.dot_dimension_numbers<[1], [0], [0], [1], [0, 0, 1, 1], [], []>} : vector<2x64xf32>, vector<64x64xf32>, vector<2x64xf32> -> vector<2x64xf32>
    %8 = arith.addf %5, %7 : vector<2x64xf32>
    %c0_12 = arith.constant 0 : index
    %c0_13 = arith.constant 0 : index
    %9 = vector.load %arg5[%c0_12, %c0_13] : memref<1x64xf32, #tpu.memory_space<vmem>>, vector<1x64xf32>
    %10 = vector.broadcast %9 : vector<1x64xf32> to vector<2x64xf32>
    %11 = arith.addf %8, %10 : vector<2x64xf32>
    %cst_14 = arith.constant 0.000000e+00 : f32
    %12 = vector.broadcast %cst_14 : f32 to vector<2x64xf32>
    %13 = arith.maximumf %11, %12 : vector<2x64xf32>
    %c0_15 = arith.constant 0 : index
    %c0_16 = arith.constant 0 : index
    %14 = vector.load %arg6[%c0_15, %c0_16] : memref<64x64xf32, #tpu.memory_space<vmem>>, vector<64x64xf32>
    %cst_17 = arith.constant dense<0.000000e+00> : vector<2x64xf32>
    %15 = tpu.matmul %13, %14, %cst_17 {dimension_numbers = #tpu.dot_dimension_numbers<[1], [0], [0], [1], [0, 0, 1, 1], [], []>} : vector<2x64xf32>, vector<64x64xf32>, vector<2x64xf32> -> vector<2x64xf32>
    %c0_18 = arith.constant 0 : index
    %c0_19 = arith.constant 0 : index
    %16 = vector.load %arg7[%c0_18, %c0_19] : memref<1x64xf32, #tpu.memory_space<vmem>>, vector<1x64xf32>
    %17 = vector.broadcast %16 : vector<1x64xf32> to vector<2x64xf32>
    %18 = arith.addf %15, %17 : vector<2x64xf32>
    %19 = arith.negf %18 : vector<2x64xf32>
    %20 = math.exp %19 : vector<2x64xf32>
    %cst_20 = arith.constant 1.000000e+00 : f32
    %21 = vector.broadcast %cst_20 : f32 to vector<2x64xf32>
    %22 = arith.addf %21, %20 : vector<2x64xf32>
    %23 = arith.divf %21, %22 : vector<2x64xf32>
    %c0_21 = arith.constant 0 : index
    %c0_22 = arith.constant 0 : index
    %24 = vector.load %arg8[%c0_21, %c0_22] : memref<64x64xf32, #tpu.memory_space<vmem>>, vector<64x64xf32>
    %cst_23 = arith.constant dense<0.000000e+00> : vector<2x64xf32>
    %25 = tpu.matmul %13, %24, %cst_23 {dimension_numbers = #tpu.dot_dimension_numbers<[1], [0], [0], [1], [0, 0, 1, 1], [], []>} : vector<2x64xf32>, vector<64x64xf32>, vector<2x64xf32> -> vector<2x64xf32>
    %c0_24 = arith.constant 0 : index
    %c0_25 = arith.constant 0 : index
    %26 = vector.load %arg9[%c0_24, %c0_25] : memref<1x64xf32, #tpu.memory_space<vmem>>, vector<1x64xf32>
    %27 = vector.broadcast %26 : vector<1x64xf32> to vector<2x64xf32>
    %28 = arith.addf %25, %27 : vector<2x64xf32>
    %29 = arith.negf %28 : vector<2x64xf32>
    %30 = math.exp %29 : vector<2x64xf32>
    %cst_26 = arith.constant 1.000000e+00 : f32
    %31 = vector.broadcast %cst_26 : f32 to vector<2x64xf32>
    %32 = arith.addf %31, %30 : vector<2x64xf32>
    %33 = arith.divf %31, %32 : vector<2x64xf32>
    %34 = vector.shape_cast %23 : vector<2x64xf32> to vector<2x64x1xf32>
    %35 = vector.broadcast %34 : vector<2x64x1xf32> to vector<2x64x256xf32>
    %36 = arith.mulf %0, %35 : vector<2x64x256xf32>
    %c0_27 = arith.constant 0 : index
    %c0_28 = arith.constant 0 : index
    %c0_29 = arith.constant 0 : index
    %37 = vector.load %arg10[%c0_27, %c0_28, %c0_29] : memref<2x64x256xf32, #tpu.memory_space<vmem>>, vector<2x64x256xf32>
    tpu.vector_store %arg10[%c0_27, %c0_28, %c0_29], %36 {strides = array<i32>} : memref<2x64x256xf32, #tpu.memory_space<vmem>>, vector<2x64x256xf32>,
    %38 = vector.shape_cast %33 : vector<2x64xf32> to vector<2x64x1xf32>
    %39 = vector.broadcast %38 : vector<2x64x1xf32> to vector<2x64x144xf32>
    %40 = arith.mulf %1, %39 : vector<2x64x144xf32>
    %c0_30 = arith.constant 0 : index
    %c0_31 = arith.constant 0 : index
    %c0_32 = arith.constant 0 : index
    %41 = vector.load %arg11[%c0_30, %c0_31, %c0_32] : memref<2x64x144xf32, #tpu.memory_space<vmem>>, vector<2x64x144xf32>
    tpu.vector_store %arg11[%c0_30, %c0_31, %c0_32], %40 {strides = array<i32>} : memref<2x64x144xf32, #tpu.memory_space<vmem>>, vector<2x64x144xf32>,
    return
  }
  func.func @transform_0(%arg0: i32) -> (i32, i32, i32) {
    %c0_i32 = arith.constant 0 : i32
    %c0_i32_0 = arith.constant 0 : i32
    %c0_i32_1 = arith.constant 0 : i32
    return %arg0, %c0_i32, %c0_i32_0 : i32, i32, i32
  }
  func.func @transform_1(%arg0: i32) -> (i32, i32, i32) {
    %c0_i32 = arith.constant 0 : i32
    %c0_i32_0 = arith.constant 0 : i32
    %c0_i32_1 = arith.constant 0 : i32
    return %arg0, %c0_i32, %c0_i32_0 : i32, i32, i32
  }
  func.func @transform_2(%arg0: i32) -> (i32, i32) {
    %c0_i32 = arith.constant 0 : i32
    %c0_i32_0 = arith.constant 0 : i32
    %c0_i32_1 = arith.constant 0 : i32
    return %c0_i32, %c0_i32_0 : i32, i32
  }
  func.func @transform_3(%arg0: i32) -> (i32, i32) {
    %c0_i32 = arith.constant 0 : i32
    %c0_i32_0 = arith.constant 0 : i32
    %c0_i32_1 = arith.constant 0 : i32
    return %c0_i32, %c0_i32_0 : i32, i32
  }
  func.func @transform_4(%arg0: i32) -> (i32, i32) {
    %c0_i32 = arith.constant 0 : i32
    %c0_i32_0 = arith.constant 0 : i32
    %c0_i32_1 = arith.constant 0 : i32
    return %c0_i32, %c0_i32_0 : i32, i32
  }
  func.func @transform_5(%arg0: i32) -> (i32, i32) {
    %c0_i32 = arith.constant 0 : i32
    %c0_i32_0 = arith.constant 0 : i32
    %c0_i32_1 = arith.constant 0 : i32
    return %c0_i32, %c0_i32_0 : i32, i32
  }
  func.func @transform_6(%arg0: i32) -> (i32, i32) {
    %c0_i32 = arith.constant 0 : i32
    %c0_i32_0 = arith.constant 0 : i32
    %c0_i32_1 = arith.constant 0 : i32
    return %c0_i32, %c0_i32_0 : i32, i32
  }
  func.func @transform_7(%arg0: i32) -> (i32, i32) {
    %c0_i32 = arith.constant 0 : i32
    %c0_i32_0 = arith.constant 0 : i32
    %c0_i32_1 = arith.constant 0 : i32
    return %c0_i32, %c0_i32_0 : i32, i32
  }
  func.func @transform_8(%arg0: i32) -> (i32, i32) {
    %c0_i32 = arith.constant 0 : i32
    %c0_i32_0 = arith.constant 0 : i32
    %c0_i32_1 = arith.constant 0 : i32
    return %c0_i32, %c0_i32_0 : i32, i32
  }
  func.func @transform_9(%arg0: i32) -> (i32, i32, i32) {
    %c0_i32 = arith.constant 0 : i32
    %c0_i32_0 = arith.constant 0 : i32
    %c0_i32_1 = arith.constant 0 : i32
    return %arg0, %c0_i32, %c0_i32_0 : i32, i32, i32
  }
  func.func @transform_10(%arg0: i32) -> (i32, i32, i32) {
    %c0_i32 = arith.constant 0 : i32
    %c0_i32_0 = arith.constant 0 : i32
    %c0_i32_1 = arith.constant 0 : i32
    return %arg0, %c0_i32, %c0_i32_0 : i32, i32, i32
  }
}

</mosaic_0001>

<llo_original>
// kernel: tpu_custom_call.1
$region0: #{tpu_custom_call.1}
  #allocation0 [shape = 'u32[]', space=smem, size = 0x4, offset = 0x4, fixed_abs, tag = 'smem constant byte address 0x4 - core index']
  #allocation1 [shape = 'u32[72,128]{1,0:T(1,128)}', space=vmem, size = 0x9000, scoped, tag = 'internal scratch']
  %s0 = inlined_call_operand.hbm [shape: f32[2,64,256], index: 0, kind: input, shape index: {}]
  %s1 = inlined_call_operand.hbm [shape: f32[2,64,144], index: 1, kind: input, shape index: {}]
  %s2 = inlined_call_operand.hbm [shape: f32[64,64], index: 2, kind: input, shape index: {}]
  %s3 = inlined_call_operand.hbm [shape: f32[64,64], index: 3, kind: input, shape index: {}]
  %s4 = inlined_call_operand.vmem [shape: f32[1,64], index: 4, kind: input, shape index: {}]
  %s5 = inlined_call_operand.hbm [shape: f32[64,64], index: 5, kind: input, shape index: {}]
  %s6 = inlined_call_operand.vmem [shape: f32[1,64], index: 6, kind: input, shape index: {}]
  %s7 = inlined_call_operand.hbm [shape: f32[64,64], index: 7, kind: input, shape index: {}]
  %s8 = inlined_call_operand.vmem [shape: f32[1,64], index: 8, kind: input, shape index: {}]
  %s9 = inlined_call_operand.hbm [shape: f32[2,64,256], index: 9, kind: output, shape index: {0}]
  %s10 = inlined_call_operand.hbm [shape: f32[2,64,144], index: 10, kind: output, shape index: {1}]
  %11 = xla_tuple %s9, %s10
  %s12 = sld [smem:[#allocation0]]
  $region78: #{tpu_custom_call.1} parent=0
    _
  %s14 = ssub.s32 1, %s12
  %s15 = scalar_select 0, %s14, %s12
  $region1: #{tpu_custom_call.1} parent=0
    #allocation2 [shape = 'u8[131072]{0}', space=vmem, size = 0x20000, scoped, tag = 'input window, operand 0, single buffered']
    #allocation3 [shape = 's32[1]{0}', space=sflag, size = 0x4, scoped, tag = 'scoped memory for tpu_custom_call.1']
    #allocation4 [shape = 's32[1]{0}', space=sflag, size = 0x4, scoped, tag = 'scoped memory for tpu_custom_call.1']
    #allocation5 [shape = 'u8[131072]{0}', space=vmem, size = 0x20000, scoped, tag = 'input window, operand 1, single buffered']
    #allocation6 [shape = 's32[1]{0}', space=sflag, size = 0x4, scoped, tag = 'scoped memory for tpu_custom_call.1']
    #allocation7 [shape = 'u8[32768]{0}', space=vmem, size = 0x8000, scoped, tag = 'input window, operand 2, single buffered']
    #allocation8 [shape = 'u8[32768]{0}', space=vmem, size = 0x8000, scoped, tag = 'input window, operand 3, single buffered']
    #allocation9 [shape = 's32[1]{0}', space=sflag, size = 0x4, scoped, tag = 'scoped memory for tpu_custom_call.1']
    #allocation10 [shape = 'u8[32768]{0}', space=vmem, size = 0x8000, scoped, tag = 'input window, operand 5, single buffered']
    #allocation11 [shape = 'u8[32768]{0}', space=vmem, size = 0x8000, scoped, tag = 'input window, operand 7, single buffered']
    #allocation12 [shape = 's32[1]{0}', space=sflag, size = 0x4, scoped, tag = 'scoped memory for tpu_custom_call.1']
    #allocation13 [shape = 'u8[131072]{0}', space=vmem, size = 0x20000, scoped, tag = 'output window, operand 0, single buffered']
    #allocation14 [shape = 'u8[131072]{0}', space=vmem, size = 0x20000, scoped, tag = 'output window, operand 1, single buffered']
    #allocation15 [shape = 's32[1]{0}', space=sflag, size = 0x4, scoped, tag = 'scoped memory for tpu_custom_call.1']
    %16 = vsyncpa [#allocation3], 0
    %17 = vsyncpa [#allocation6], 0
    %18 = vsyncpa [#allocation9], 0
    %19 = vsyncpa [#allocation12], 0
    %20 = vsyncpa [#allocation4], 0
    %21 = vsyncpa [#allocation15], 0
    // Predicated region
    $region2: #{tpu_custom_call.1} parent=1 // pred_check
      _
    $region3: #{tpu_custom_call.1} parent=1 // pred_check_branch
      %23 = sbr.rel (0) target = $region5
    $region4: #{tpu_custom_call.1} parent=1 // pred_region
      %25 = vsyncadd [#allocation3], 0
      %s26 = sshll.u32 %s0, 4
      %s27 = int_to_ptr.hbm [resolvable:$true] %s26
      %s28 = sshll.u32 [#allocation2], 4
      %s29 = int_to_ptr.vmem [resolvable:$true] %s28
      %34 = dma.hbm_to_vmem [thread:$0]  %s27, 4096, %s29, [#allocation3], 256, 256, 16
    $region5: #{tpu_custom_call.1} parent=1 // pred_fallthru
      _
    // Predicated region
    $region6: #{tpu_custom_call.1} parent=1 // pred_check
      _
    $region7: #{tpu_custom_call.1} parent=1 // pred_check_branch
      %36 = sbr.rel (0) target = $region9
    $region8: #{tpu_custom_call.1} parent=1 // pred_region
      %38 = vsyncadd [#allocation6], 0
      %s39 = sshll.u32 %s1, 4
      %s40 = int_to_ptr.hbm [resolvable:$true] %s39
      %s41 = sshll.u32 [#allocation5], 4
      %s42 = int_to_ptr.vmem [resolvable:$true] %s41
      %47 = dma.hbm_to_vmem [thread:$0]  %s40, 4096, %s42, [#allocation6], 256, 256, 16
    $region9: #{tpu_custom_call.1} parent=1 // pred_fallthru
      _
    // Predicated region
    $region10: #{tpu_custom_call.1} parent=1 // pred_check
      _
    $region11: #{tpu_custom_call.1} parent=1 // pred_check_branch
      %49 = sbr.rel (0) target = $region13
    $region12: #{tpu_custom_call.1} parent=1 // pred_region
      %51 = vsyncadd [#allocation6], 0
      %s52 = sshll.u32 %s2, 4
      %s53 = int_to_ptr.hbm [resolvable:$true] %s52
      %s54 = sshll.u32 [#allocation7], 4
      %s55 = int_to_ptr.vmem [resolvable:$true] %s54
      %60 = dma.hbm_to_vmem [thread:$0]  %s53, 1024, %s55, [#allocation6], 128, 128, 8
    $region13: #{tpu_custom_call.1} parent=1 // pred_fallthru
      _
    // Predicated region
    $region14: #{tpu_custom_call.1} parent=1 // pred_check
      _
    $region15: #{tpu_custom_call.1} parent=1 // pred_check_branch
      %62 = sbr.rel (0) target = $region17
    $region16: #{tpu_custom_call.1} parent=1 // pred_region
      %64 = vsyncadd [#allocation9], 0
      %s65 = sshll.u32 %s3, 4
      %s66 = int_to_ptr.hbm [resolvable:$true] %s65
      %s67 = sshll.u32 [#allocation8], 4
      %s68 = int_to_ptr.vmem [resolvable:$true] %s67
      %73 = dma.hbm_to_vmem [thread:$0]  %s66, 1024, %s68, [#allocation9], 128, 128, 8
    $region17: #{tpu_custom_call.1} parent=1 // pred_fallthru
      _
    // Predicated region
    $region18: #{tpu_custom_call.1} parent=1 // pred_check
      _
    $region19: #{tpu_custom_call.1} parent=1 // pred_check_branch
      %75 = sbr.rel (0) target = $region21
    $region20: #{tpu_custom_call.1} parent=1 // pred_region
      _
    $region21: #{tpu_custom_call.1} parent=1 // pred_fallthru
      _
    // Predicated region
    $region22: #{tpu_custom_call.1} parent=1 // pred_check
      _
    $region23: #{tpu_custom_call.1} parent=1 // pred_check_branch
      %77 = sbr.rel (0) target = $region25
    $region24: #{tpu_custom_call.1} parent=1 // pred_region
      %79 = vsyncadd [#allocation9], 0
      %s80 = sshll.u32 %s5, 4
      %s81 = int_to_ptr.hbm [resolvable:$true] %s80
      %s82 = sshll.u32 [#allocation10], 4
      %s83 = int_to_ptr.vmem [resolvable:$true] %s82
      %88 = dma.hbm_to_vmem [thread:$0]  %s81, 1024, %s83, [#allocation9], 128, 128, 8
    $region25: #{tpu_custom_call.1} parent=1 // pred_fallthru
      _
    // Predicated region
    $region26: #{tpu_custom_call.1} parent=1 // pred_check
      _
    $region27: #{tpu_custom_call.1} parent=1 // pred_check_branch
      %90 = sbr.rel (0) target = $region29
    $region28: #{tpu_custom_call.1} parent=1 // pred_region
      _
    $region29: #{tpu_custom_call.1} parent=1 // pred_fallthru
      _
    // Predicated region
    $region30: #{tpu_custom_call.1} parent=1 // pred_check
      _
    $region31: #{tpu_custom_call.1} parent=1 // pred_check_branch
      %92 = sbr.rel (0) target = $region33
    $region32: #{tpu_custom_call.1} parent=1 // pred_region
      %94 = vsyncadd [#allocation12], 0
      %s95 = sshll.u32 %s7, 4
      %s96 = int_to_ptr.hbm [resolvable:$true] %s95
      %s97 = sshll.u32 [#allocation11], 4
      %s98 = int_to_ptr.vmem [resolvable:$true] %s97
      %103 = dma.hbm_to_vmem [thread:$0]  %s96, 1024, %s98, [#allocation12], 128, 128, 8
    $region33: #{tpu_custom_call.1} parent=1 // pred_fallthru
      _
    // Predicated region
    $region34: #{tpu_custom_call.1} parent=1 // pred_check
      _
    $region35: #{tpu_custom_call.1} parent=1 // pred_check_branch
      %105 = sbr.rel (0) target = $region37
    $region36: #{tpu_custom_call.1} parent=1 // pred_region
      _
    $region37: #{tpu_custom_call.1} parent=1 // pred_fallthru
      _
    // Predicated region
    $region38: #{tpu_custom_call.1} parent=1 // pred_check
      _
    $region39: #{tpu_custom_call.1} parent=1 // pred_check_branch
      %107 = sbr.rel (0) target = $region41
    $region40: #{tpu_custom_call.1} parent=1 // pred_region
      %109 = dma.done [#allocation3], 4096
    $region41: #{tpu_custom_call.1} parent=1 // pred_fallthru
      _
    // Predicated region
    $region42: #{tpu_custom_call.1} parent=1 // pred_check
      _
    $region43: #{tpu_custom_call.1} parent=1 // pred_check_branch
      %111 = sbr.rel (0) target = $region45
    $region44: #{tpu_custom_call.1} parent=1 // pred_region
      %113 = dma.done [#allocation6], 4096
    $region45: #{tpu_custom_call.1} parent=1 // pred_fallthru
      _
    // Predicated region
    $region46: #{tpu_custom_call.1} parent=1 // pred_check
      _
    $region47: #{tpu_custom_call.1} parent=1 // pred_check_branch
      %115 = sbr.rel (0) target = $region49
    $region48: #{tpu_custom_call.1} parent=1 // pred_region
      %117 = dma.done [#allocation6], 1024
    $region49: #{tpu_custom_call.1} parent=1 // pred_fallthru
      _
    // Predicated region
    $region50: #{tpu_custom_call.1} parent=1 // pred_check
      _
    $region51: #{tpu_custom_call.1} parent=1 // pred_check_branch
      %119 = sbr.rel (0) target = $region53
    $region52: #{tpu_custom_call.1} parent=1 // pred_region
      %121 = dma.done [#allocation9], 1024
    $region53: #{tpu_custom_call.1} parent=1 // pred_fallthru
      _
    // Predicated region
    $region54: #{tpu_custom_call.1} parent=1 // pred_check
      _
    $region55: #{tpu_custom_call.1} parent=1 // pred_check_branch
      %123 = sbr.rel (0) target = $region57
    $region56: #{tpu_custom_call.1} parent=1 // pred_region
      %125 = dma.done [#allocation9], 1024
    $region57: #{tpu_custom_call.1} parent=1 // pred_fallthru
      _
    // Predicated region
    $region58: #{tpu_custom_call.1} parent=1 // pred_check
      _
    $region59: #{tpu_custom_call.1} parent=1 // pred_check_branch
      %127 = sbr.rel (0) target = $region61
    $region60: #{tpu_custom_call.1} parent=1 // pred_region
      %129 = dma.done [#allocation12], 1024
    $region61: #{tpu_custom_call.1} parent=1 // pred_fallthru
      _
    %v130 = vld [vmem:[#allocation2] sm:$0xff]
    %v131 = vld [vmem:[#allocation2 + $0x8] sm:$0xff]
    %v132 = vld [vmem:[#allocation2 + $0x10] sm:$0xff]
    %v133 = vld [vmem:[#allocation2 + $0x18] sm:$0xff]
    %v134 = vld [vmem:[#allocation2 + $0x20] sm:$0xff]
    %v135 = vld [vmem:[#allocation2 + $0x28] sm:$0xff]
    %v136 = vld [vmem:[#allocation2 + $0x30] sm:$0xff]
    %v137 = vld [vmem:[#allocation2 + $0x38] sm:$0xff]
    %v138 = vld [vmem:[#allocation2 + $0x40] sm:$0xff]
    %v139 = vld [vmem:[#allocation2 + $0x48] sm:$0xff]
    %v140 = vld [vmem:[#allocation2 + $0x50] sm:$0xff]
    %v141 = vld [vmem:[#allocation2 + $0x58] sm:$0xff]
    %v142 = vld [vmem:[#allocation2 + $0x60] sm:$0xff]
    %v143 = vld [vmem:[#allocation2 + $0x68] sm:$0xff]
    %v144 = vld [vmem:[#allocation2 + $0x70] sm:$0xff]
    %v145 = vld [vmem:[#allocation2 + $0x78] sm:$0xff]
    %v146 = vld [vmem:[#allocation2 + $0x80] sm:$0xff]
    %v147 = vld [vmem:[#allocation2 + $0x88] sm:$0xff]
    %v148 = vld [vmem:[#allocation2 + $0x90] sm:$0xff]
    %v149 = vld [vmem:[#allocation2 + $0x98] sm:$0xff]
    %v150 = vld [vmem:[#allocation2 + $0xa0] sm:$0xff]
    %v151 = vld [vmem:[#allocation2 + $0xa8] sm:$0xff]
    %v152 = vld [vmem:[#allocation2 + $0xb0] sm:$0xff]
    %v153 = vld [vmem:[#allocation2 + $0xb8] sm:$0xff]
    %v154 = vld [vmem:[#allocation2 + $0xc0] sm:$0xff]
    %v155 = vld [vmem:[#allocation2 + $0xc8] sm:$0xff]
    %v156 = vld [vmem:[#allocation2 + $0xd0] sm:$0xff]
    %v157 = vld [vmem:[#allocation2 + $0xd8] sm:$0xff]
    %v158 = vld [vmem:[#allocation2 + $0xe0] sm:$0xff]
    %v159 = vld [vmem:[#allocation2 + $0xe8] sm:$0xff]
    %v160 = vld [vmem:[#allocation2 + $0xf0] sm:$0xff]
    %v161 = vld [vmem:[#allocation2 + $0xf8] sm:$0xff]
    %v162 = vld [vmem:[#allocation5] sm:$0xff]
    %v163 = vld [vmem:[#allocation5 + $0x8] sm:$0xff]
    %v164 = vld [vmem:[#allocation5 + $0x10] sm:$0xff]
    %v165 = vld [vmem:[#allocation5 + $0x18] sm:$0xff]
    %v166 = vld [vmem:[#allocation5 + $0x20] sm:$0xff]
    %v167 = vld [vmem:[#allocation5 + $0x28] sm:$0xff]
    %v168 = vld [vmem:[#allocation5 + $0x30] sm:$0xff]
    %v169 = vld [vmem:[#allocation5 + $0x38] sm:$0xff]
    %v170 = vld [vmem:[#allocation5 + $0x40] sm:$0xff]
    %v171 = vld [vmem:[#allocation5 + $0x48] sm:$0xff]
    %v172 = vld [vmem:[#allocation5 + $0x50] sm:$0xff]
    %v173 = vld [vmem:[#allocation5 + $0x58] sm:$0xff]
    %v174 = vld [vmem:[#allocation5 + $0x60] sm:$0xff]
    %v175 = vld [vmem:[#allocation5 + $0x68] sm:$0xff]
    %v176 = vld [vmem:[#allocation5 + $0x70] sm:$0xff]
    %v177 = vld [vmem:[#allocation5 + $0x78] sm:$0xff]
    %v178 = vld [vmem:[#allocation5 + $0x80] sm:$0xff]
    %v179 = vld [vmem:[#allocation5 + $0x88] sm:$0xff]
    %v180 = vld [vmem:[#allocation5 + $0x90] sm:$0xff]
    %v181 = vld [vmem:[#allocation5 + $0x98] sm:$0xff]
    %v182 = vld [vmem:[#allocation5 + $0xa0] sm:$0xff]
    %v183 = vld [vmem:[#allocation5 + $0xa8] sm:$0xff]
    %v184 = vld [vmem:[#allocation5 + $0xb0] sm:$0xff]
    %v185 = vld [vmem:[#allocation5 + $0xb8] sm:$0xff]
    %v186 = vld [vmem:[#allocation5 + $0xc0] sm:$0xff]
    %v187 = vld [vmem:[#allocation5 + $0xc8] sm:$0xff]
    %v188 = vld [vmem:[#allocation5 + $0xd0] sm:$0xff]
    %v189 = vld [vmem:[#allocation5 + $0xd8] sm:$0xff]
    %v190 = vld [vmem:[#allocation5 + $0xe0] sm:$0xff]
    %v191 = vld [vmem:[#allocation5 + $0xe8] sm:$0xff]
    %v192 = vld [vmem:[#allocation5 + $0xf0] sm:$0xff]
    %v193 = vld [vmem:[#allocation5 + $0xf8] sm:$0xff]
    %v194 = vadd.f32 %v130, %v131
    %195 = vadd.xlane.f32.xlu0 %v194
    %v196 = vpop.xlane.xlu0 %195
    %v197 = vadd.f32 %v132, %v133
    %198 = vadd.xlane.f32.xlu0 %v197
    %v199 = vpop.xlane.xlu0 %198
    %v200 = vadd.f32 %v134, %v135
    %201 = vadd.xlane.f32.xlu0 %v200
    %v202 = vpop.xlane.xlu0 %201
    %v203 = vadd.f32 %v136, %v137
    %204 = vadd.xlane.f32.xlu0 %v203
    %v205 = vpop.xlane.xlu0 %204
    %v206 = vadd.f32 %v138, %v139
    %207 = vadd.xlane.f32.xlu0 %v206
    %v208 = vpop.xlane.xlu0 %207
    %v209 = vadd.f32 %v140, %v141
    %210 = vadd.xlane.f32.xlu0 %v209
    %v211 = vpop.xlane.xlu0 %210
    %v212 = vadd.f32 %v142, %v143
    %213 = vadd.xlane.f32.xlu0 %v212
    %v214 = vpop.xlane.xlu0 %213
    %v215 = vadd.f32 %v144, %v145
    %216 = vadd.xlane.f32.xlu0 %v215
    %v217 = vpop.xlane.xlu0 %216
    %v218 = vadd.f32 %v146, %v147
    %219 = vadd.xlane.f32.xlu0 %v218
    %v220 = vpop.xlane.xlu0 %219
    %v221 = vadd.f32 %v148, %v149
    %222 = vadd.xlane.f32.xlu0 %v221
    %v223 = vpop.xlane.xlu0 %222
    %v224 = vadd.f32 %v150, %v151
    %225 = vadd.xlane.f32.xlu0 %v224
    %v226 = vpop.xlane.xlu0 %225
    %v227 = vadd.f32 %v152, %v153
    %228 = vadd.xlane.f32.xlu0 %v227
    %v229 = vpop.xlane.xlu0 %228
    %v230 = vadd.f32 %v154, %v155
    %231 = vadd.xlane.f32.xlu0 %v230
    %v232 = vpop.xlane.xlu0 %231
    %v233 = vadd.f32 %v156, %v157
    %234 = vadd.xlane.f32.xlu0 %v233
    %v235 = vpop.xlane.xlu0 %234
    %v236 = vadd.f32 %v158, %v159
    %237 = vadd.xlane.f32.xlu0 %v236
    %v238 = vpop.xlane.xlu0 %237
    %v239 = vadd.f32 %v160, %v161
    %240 = vadd.xlane.f32.xlu0 %v239
    %v241 = vpop.xlane.xlu0 %240
    %vm242 = vcmask 130048
    %v243 = vsel %vm242, %v163, 0.0
    %v244 = vadd.f32 %v162, %v243
    %245 = vadd.xlane.f32.xlu0 %v244
    %v246 = vpop.xlane.xlu0 %245
    %v247 = vsel %vm242, %v165, 0.0
    %v248 = vadd.f32 %v164, %v247
    %249 = vadd.xlane.f32.xlu0 %v248
    %v250 = vpop.xlane.xlu0 %249
    %v251 = vsel %vm242, %v167, 0.0
    %v252 = vadd.f32 %v166, %v251
    %253 = vadd.xlane.f32.xlu0 %v252
    %v254 = vpop.xlane.xlu0 %253
    %v255 = vsel %vm242, %v169, 0.0
    %v256 = vadd.f32 %v168, %v255
    %257 = vadd.xlane.f32.xlu0 %v256
    %v258 = vpop.xlane.xlu0 %257
    %v259 = vsel %vm242, %v171, 0.0
    %v260 = vadd.f32 %v170, %v259
    %261 = vadd.xlane.f32.xlu0 %v260
    %v262 = vpop.xlane.xlu0 %261
    %v263 = vsel %vm242, %v173, 0.0
    %v264 = vadd.f32 %v172, %v263
    %265 = vadd.xlane.f32.xlu0 %v264
    %v266 = vpop.xlane.xlu0 %265
    %v267 = vsel %vm242, %v175, 0.0
    %v268 = vadd.f32 %v174, %v267
    %269 = vadd.xlane.f32.xlu0 %v268
    %v270 = vpop.xlane.xlu0 %269
    %v271 = vsel %vm242, %v177, 0.0
    %v272 = vadd.f32 %v176, %v271
    %273 = vadd.xlane.f32.xlu0 %v272
    %v274 = vpop.xlane.xlu0 %273
    %v275 = vsel %vm242, %v179, 0.0
    %v276 = vadd.f32 %v178, %v275
    %277 = vadd.xlane.f32.xlu0 %v276
    %v278 = vpop.xlane.xlu0 %277
    %v279 = vsel %vm242, %v181, 0.0
    %v280 = vadd.f32 %v180, %v279
    %281 = vadd.xlane.f32.xlu0 %v280
    %v282 = vpop.xlane.xlu0 %281
    %v283 = vsel %vm242, %v183, 0.0
    %v284 = vadd.f32 %v182, %v283
    %285 = vadd.xlane.f32.xlu0 %v284
    %v286 = vpop.xlane.xlu0 %285
    %v287 = vsel %vm242, %v185, 0.0
    %v288 = vadd.f32 %v184, %v287
    %289 = vadd.xlane.f32.xlu0 %v288
    %v290 = vpop.xlane.xlu0 %289
    %v291 = vsel %vm242, %v187, 0.0
    %v292 = vadd.f32 %v186, %v291
    %293 = vadd.xlane.f32.xlu0 %v292
    %v294 = vpop.xlane.xlu0 %293
    %v295 = vsel %vm242, %v189, 0.0
    %v296 = vadd.f32 %v188, %v295
    %297 = vadd.xlane.f32.xlu0 %v296
    %v298 = vpop.xlane.xlu0 %297
    %v299 = vsel %vm242, %v191, 0.0
    %v300 = vadd.f32 %v190, %v299
    %301 = vadd.xlane.f32.xlu0 %v300
    %v302 = vpop.xlane.xlu0 %301
    %v303 = vsel %vm242, %v193, 0.0
    %v304 = vadd.f32 %v192, %v303
    %305 = vadd.xlane.f32.xlu0 %v304
    %v306 = vpop.xlane.xlu0 %305
    %v307 = vld [vmem:[#allocation7] sm:$0xff]
    %v308 = vld [vmem:[#allocation7 + $0x8] sm:$0xff]
    %v309 = vld [vmem:[#allocation7 + $0x10] sm:$0xff]
    %v310 = vld [vmem:[#allocation7 + $0x18] sm:$0xff]
    %v311 = vld [vmem:[#allocation7 + $0x20] sm:$0xff]
    %v312 = vld [vmem:[#allocation7 + $0x28] sm:$0xff]
    %v313 = vld [vmem:[#allocation7 + $0x30] sm:$0xff]
    %v314 = vld [vmem:[#allocation7 + $0x38] sm:$0xff]
    %v315 = vld [vmem:[#allocation8] sm:$0xff]
    %v316 = vld [vmem:[#allocation8 + $0x8] sm:$0xff]
    %v317 = vld [vmem:[#allocation8 + $0x10] sm:$0xff]
    %v318 = vld [vmem:[#allocation8 + $0x18] sm:$0xff]
    %v319 = vld [vmem:[#allocation8 + $0x20] sm:$0xff]
    %v320 = vld [vmem:[#allocation8 + $0x28] sm:$0xff]
    %v321 = vld [vmem:[#allocation8 + $0x30] sm:$0xff]
    %v322 = vld [vmem:[#allocation8 + $0x38] sm:$0xff]
    %v339 = vlaneseq
    %v340 = vand.u32 %v339, 127
    %v341 = vperm.slane %v246, %v340
    %v342 = vadd.s32 %v340, 4294967288
    %v343 = vperm.slane %v250, %v342
    %vm344 = vcmask 130112
    %v345 = vsel %vm344, %v343, %v341
    %v346 = vadd.s32 %v340, 4294967280
    %v347 = vperm.slane %v254, %v346
    %vm348 = vcmask 195712
    %v349 = vsel %vm348, %v347, %v345
    %v350 = vadd.s32 %v340, 4294967272
    %v351 = vperm.slane %v258, %v350
    %vm352 = vcmask 261312
    %v353 = vsel %vm352, %v351, %v349
    %v354 = vadd.s32 %v340, 4294967264
    %v355 = vperm.slane %v262, %v354
    %vm356 = vcmask 326912
    %v357 = vsel %vm356, %v355, %v353
    %v358 = vadd.s32 %v340, 4294967256
    %v359 = vperm.slane %v266, %v358
    %vm360 = vcmask 392512
    %v361 = vsel %vm360, %v359, %v357
    %v362 = vadd.s32 %v340, 4294967248
    %v363 = vperm.slane %v270, %v362
    %vm364 = vcmask 458112
    %v365 = vsel %vm364, %v363, %v361
    %v366 = vadd.s32 %v340, 4294967240
    %v367 = vperm.slane %v274, %v366
    %vm368 = vcmask 523712
    %v369 = vsel %vm368, %v367, %v365
    %v370 = vperm.slane %v278, %v340
    %v371 = vperm.slane %v282, %v342
    %v372 = vsel %vm344, %v371, %v370
    %v373 = vperm.slane %v286, %v346
    %v374 = vsel %vm348, %v373, %v372
    %v375 = vperm.slane %v290, %v350
    %v376 = vsel %vm352, %v375, %v374
    %v377 = vperm.slane %v294, %v354
    %v378 = vsel %vm356, %v377, %v376
    %v379 = vperm.slane %v298, %v358
    %v380 = vsel %vm360, %v379, %v378
    %v381 = vperm.slane %v302, %v362
    %v382 = vsel %vm364, %v381, %v380
    %v383 = vperm.slane %v306, %v366
    %v384 = vsel %vm368, %v383, %v382
    %vm385 = vcmask 1041409
    %v386 = vsel %vm385, %v384, %v369
    %vm387 = vcmask 523264
    %v388 = vsel %vm387, %v386, 0
    %390 = vmatpush.msra.mxu0 0.0
    %391 = vmatpush.msra.mxu0 0.0
    %392 = vmatpush.msra.mxu0 0.0
    %393 = vmatpush.msra.mxu0 0.0
    %394 = vmatpush.msra.mxu0 0.0
    %395 = vmatpush.msra.mxu0 0.0
    %396 = vmatpush.msra.mxu0 0.0
    %397 = vmatpush.msra.mxu0 0.0
    %398 = vmatpush.msra.mxu0 %v322
    %399 = vmatpush.msra.mxu0 %v321
    %400 = vmatpush.msra.mxu0 %v320
    %401 = vmatpush.msra.mxu0 %v319
    %402 = vmatpush.msra.mxu0 %v318
    %403 = vmatpush.msra.mxu0 %v317
    %404 = vmatpush.msra.mxu0 %v316
    %405 = vmatpush.msra.mxu0 %v315
    %406 = vmatmul.f32.gmra.mxu0 %v388
    %v407 = vpop.f32.mrf.mxu0
    %v408 = vadd.f32 0.0, %v407
    %409 = vdwg.mxu0
    %v426 = vperm.slane %v196, %v340
    %v427 = vperm.slane %v199, %v342
    %v428 = vsel %vm344, %v427, %v426
    %v429 = vperm.slane %v202, %v346
    %v430 = vsel %vm348, %v429, %v428
    %v431 = vperm.slane %v205, %v350
    %v432 = vsel %vm352, %v431, %v430
    %v433 = vperm.slane %v208, %v354
    %v434 = vsel %vm356, %v433, %v432
    %v435 = vperm.slane %v211, %v358
    %v436 = vsel %vm360, %v435, %v434
    %v437 = vperm.slane %v214, %v362
    %v438 = vsel %vm364, %v437, %v436
    %v439 = vperm.slane %v217, %v366
    %v440 = vsel %vm368, %v439, %v438
    %v441 = vperm.slane %v220, %v340
    %v442 = vperm.slane %v223, %v342
    %v443 = vsel %vm344, %v442, %v441
    %v444 = vperm.slane %v226, %v346
    %v445 = vsel %vm348, %v444, %v443
    %v446 = vperm.slane %v229, %v350
    %v447 = vsel %vm352, %v446, %v445
    %v448 = vperm.slane %v232, %v354
    %v449 = vsel %vm356, %v448, %v447
    %v450 = vperm.slane %v235, %v358
    %v451 = vsel %vm360, %v450, %v449
    %v452 = vperm.slane %v238, %v362
    %v453 = vsel %vm364, %v452, %v451
    %v454 = vperm.slane %v241, %v366
    %v455 = vsel %vm368, %v454, %v453
    %v456 = vsel %vm385, %v455, %v440
    %v457 = vsel %vm387, %v456, 0
    %459 = vmatpush.msra.mxu0 0.0
    %460 = vmatpush.msra.mxu0 0.0
    %461 = vmatpush.msra.mxu0 0.0
    %462 = vmatpush.msra.mxu0 0.0
    %463 = vmatpush.msra.mxu0 0.0
    %464 = vmatpush.msra.mxu0 0.0
    %465 = vmatpush.msra.mxu0 0.0
    %466 = vmatpush.msra.mxu0 0.0
    %467 = vmatpush.msra.mxu0 %v314
    %468 = vmatpush.msra.mxu0 %v313
    %469 = vmatpush.msra.mxu0 %v312
    %470 = vmatpush.msra.mxu0 %v311
    %471 = vmatpush.msra.mxu0 %v310
    %472 = vmatpush.msra.mxu0 %v309
    %473 = vmatpush.msra.mxu0 %v308
    %474 = vmatpush.msra.mxu0 %v307
    %475 = vmatmul.f32.gmra.mxu0 %v457
    %v476 = vpop.f32.mrf.mxu0
    %v477 = vadd.f32 %v408, %v476
    %478 = vdwg.mxu0
    %v479 = vld [vmem:[%s4] sm:$0x1]
    %v481 = vperm.slane %v479, 0
    %v483 = vadd.f32 %v477, %v481
    %v484 = vmax.f32 %v483, 0.0
    %v485 = vld [vmem:[#allocation10] sm:$0xff]
    %v486 = vld [vmem:[#allocation10 + $0x8] sm:$0xff]
    %v487 = vld [vmem:[#allocation10 + $0x10] sm:$0xff]
    %v488 = vld [vmem:[#allocation10 + $0x18] sm:$0xff]
    %v489 = vld [vmem:[#allocation10 + $0x20] sm:$0xff]
    %v490 = vld [vmem:[#allocation10 + $0x28] sm:$0xff]
    %v491 = vld [vmem:[#allocation10 + $0x30] sm:$0xff]
    %v492 = vld [vmem:[#allocation10 + $0x38] sm:$0xff]
    %v493 = vld [vmem:[%s6] sm:$0x1]
    %v495 = vperm.slane %v493, 0
    %v498 = vsel %vm387, %v484, 0
    %500 = vmatpush.msra.mxu0 0.0
    %501 = vmatpush.msra.mxu0 0.0
    %502 = vmatpush.msra.mxu0 0.0
    %503 = vmatpush.msra.mxu0 0.0
    %504 = vmatpush.msra.mxu0 0.0
    %505 = vmatpush.msra.mxu0 0.0
    %506 = vmatpush.msra.mxu0 0.0
    %507 = vmatpush.msra.mxu0 0.0
    %508 = vmatpush.msra.mxu0 %v492
    %509 = vmatpush.msra.mxu0 %v491
    %510 = vmatpush.msra.mxu0 %v490
    %511 = vmatpush.msra.mxu0 %v489
    %512 = vmatpush.msra.mxu0 %v488
    %513 = vmatpush.msra.mxu0 %v487
    %514 = vmatpush.msra.mxu0 %v486
    %515 = vmatpush.msra.mxu0 %v485
    %516 = vmatmul.f32.gmra.mxu0 %v498
    %v517 = vpop.f32.mrf.mxu0
    %v518 = vadd.f32 %v495, %v517
    %519 = vdwg.mxu0
    %v520 = vxor.u32 %v518, 2147483648
    %v521 = vmul.f32 %v520, 1.442695
    %v522 = vpow.pop %v521
    %v523 = vadd.f32 %v522, 1.0
    %v524 = vrcp.pop %v523
    %v525 = vmul.f32 %v523, %v524
    %v526 = vsub.f32 1.0, %v525
    %v527 = vmul.f32 %v524, %v526
    %v528 = vadd.f32 %v524, %v527
    %vm529 = vweird.f32 %v523
    %vm530 = vweird.f32 %v524
    %vm531 = vmor %vm529, %vm530
    %v532 = vsel %vm531, %v524, %v528
    %v533 = vand.u32 2147483647, %v523
    %vm534 = vcmp.eq.f32.partialorder %v533, 8.507059e+37
    %v535 = vand.u32 %v523, 2147483648
    %v536 = vor.u32 1.1754944e-38, %v535
    %v537 = vsel %vm534, %v536, %v532
    %v538 = vmul.f32 1.0, %v537
    %v539 = vld [vmem:[#allocation11] sm:$0xff]
    %v540 = vld [vmem:[#allocation11 + $0x8] sm:$0xff]
    %v541 = vld [vmem:[#allocation11 + $0x10] sm:$0xff]
    %v542 = vld [vmem:[#allocation11 + $0x18] sm:$0xff]
    %v543 = vld [vmem:[#allocation11 + $0x20] sm:$0xff]
    %v544 = vld [vmem:[#allocation11 + $0x28] sm:$0xff]
    %v545 = vld [vmem:[#allocation11 + $0x30] sm:$0xff]
    %v546 = vld [vmem:[#allocation11 + $0x38] sm:$0xff]
    %v547 = vld [vmem:[%s8] sm:$0x1]
    %v549 = vperm.slane %v547, 0
    %551 = vmatpush.msra.mxu0 0.0
    %552 = vmatpush.msra.mxu0 0.0
    %553 = vmatpush.msra.mxu0 0.0
    %554 = vmatpush.msra.mxu0 0.0
    %555 = vmatpush.msra.mxu0 0.0
    %556 = vmatpush.msra.mxu0 0.0
    %557 = vmatpush.msra.mxu0 0.0
    %558 = vmatpush.msra.mxu0 0.0
    %559 = vmatpush.msra.mxu0 %v546
    %560 = vmatpush.msra.mxu0 %v545
    %561 = vmatpush.msra.mxu0 %v544
    %562 = vmatpush.msra.mxu0 %v543
    %563 = vmatpush.msra.mxu0 %v542
    %564 = vmatpush.msra.mxu0 %v541
    %565 = vmatpush.msra.mxu0 %v540
    %566 = vmatpush.msra.mxu0 %v539
    %567 = vmatmul.f32.gmra.mxu0 %v498
    %v568 = vpop.f32.mrf.mxu0
    %v569 = vadd.f32 %v549, %v568
    %570 = vdwg.mxu0
    %v571 = vxor.u32 %v569, 2147483648
    %v572 = vmul.f32 %v571, 1.442695
    %v573 = vpow.pop %v572
    %v574 = vadd.f32 %v573, 1.0
    %v575 = vrcp.pop %v574
    %v576 = vmul.f32 %v574, %v575
    %v577 = vsub.f32 1.0, %v576
    %v578 = vmul.f32 %v575, %v577
    %v579 = vadd.f32 %v575, %v578
    %vm580 = vweird.f32 %v574
    %vm581 = vweird.f32 %v575
    %vm582 = vmor %vm580, %vm581
    %v583 = vsel %vm582, %v575, %v579
    %v584 = vand.u32 2147483647, %v574
    %vm585 = vcmp.eq.f32.partialorder %v584, 8.507059e+37
    %v586 = vand.u32 %v574, 2147483648
    %v587 = vor.u32 1.1754944e-38, %v586
    %v588 = vsel %vm585, %v587, %v583
    %v589 = vmul.f32 1.0, %v588
    %v590 = vperm.slane %v538, 0
    %v591 = vlaneseq
    %v592 = vshrl.u32 %v591, 7
    %594 = vset.pattern.permute.xlu0 %v592
    %595 = vperm.xlu0 %594, %v590
    %v596 = vpop.permute.xlu0 %595
    %v597 = vlaneseq
    %v598 = vshrl.u32 %v597, 7
    %v599 = vadd.s32 %v598, 8
    %600 = vset.pattern.permute.xlu0 %v599
    %601 = vperm.xlu0 %600, %v590
    %v602 = vpop.permute.xlu0 %601
    %v603 = vlaneseq
    %v604 = vshrl.u32 %v603, 7
    %v605 = vadd.s32 %v604, 16
    %606 = vset.pattern.permute.xlu0 %v605
    %607 = vperm.xlu0 %606, %v590
    %v608 = vpop.permute.xlu0 %607
    %v609 = vlaneseq
    %v610 = vshrl.u32 %v609, 7
    %v611 = vadd.s32 %v610, 24
    %612 = vset.pattern.permute.xlu0 %v611
    %613 = vperm.xlu0 %612, %v590
    %v614 = vpop.permute.xlu0 %613
    %v615 = vlaneseq
    %v616 = vshrl.u32 %v615, 7
    %v617 = vadd.s32 %v616, 32
    %618 = vset.pattern.permute.xlu0 %v617
    %619 = vperm.xlu0 %618, %v590
    %v620 = vpop.permute.xlu0 %619
    %v621 = vlaneseq
    %v622 = vshrl.u32 %v621, 7
    %v623 = vadd.s32 %v622, 40
    %624 = vset.pattern.permute.xlu0 %v623
    %625 = vperm.xlu0 %624, %v590
    %v626 = vpop.permute.xlu0 %625
    %v627 = vlaneseq
    %v628 = vshrl.u32 %v627, 7
    %v629 = vadd.s32 %v628, 48
    %630 = vset.pattern.permute.xlu0 %v629
    %631 = vperm.xlu0 %630, %v590
    %v632 = vpop.permute.xlu0 %631
    %v633 = vlaneseq
    %v634 = vshrl.u32 %v633, 7
    %v635 = vadd.s32 %v634, 56
    %636 = vset.pattern.permute.xlu0 %v635
    %637 = vperm.xlu0 %636, %v590
    %v638 = vpop.permute.xlu0 %637
    %v639 = vperm.slane %v538, 1
    %v640 = vlaneseq
    %v641 = vshrl.u32 %v640, 7
    %643 = vset.pattern.permute.xlu0 %v641
    %644 = vperm.xlu0 %643, %v639
    %v645 = vpop.permute.xlu0 %644
    %v646 = vlaneseq
    %v647 = vshrl.u32 %v646, 7
    %v648 = vadd.s32 %v647, 8
    %649 = vset.pattern.permute.xlu0 %v648
    %650 = vperm.xlu0 %649, %v639
    %v651 = vpop.permute.xlu0 %650
    %v652 = vlaneseq
    %v653 = vshrl.u32 %v652, 7
    %v654 = vadd.s32 %v653, 16
    %655 = vset.pattern.permute.xlu0 %v654
    %656 = vperm.xlu0 %655, %v639
    %v657 = vpop.permute.xlu0 %656
    %v658 = vlaneseq
    %v659 = vshrl.u32 %v658, 7
    %v660 = vadd.s32 %v659, 24
    %661 = vset.pattern.permute.xlu0 %v660
    %662 = vperm.xlu0 %661, %v639
    %v663 = vpop.permute.xlu0 %662
    %v664 = vlaneseq
    %v665 = vshrl.u32 %v664, 7
    %v666 = vadd.s32 %v665, 32
    %667 = vset.pattern.permute.xlu0 %v666
    %668 = vperm.xlu0 %667, %v639
    %v669 = vpop.permute.xlu0 %668
    %v670 = vlaneseq
    %v671 = vshrl.u32 %v670, 7
    %v672 = vadd.s32 %v671, 40
    %673 = vset.pattern.permute.xlu0 %v672
    %674 = vperm.xlu0 %673, %v639
    %v675 = vpop.permute.xlu0 %674
    %v676 = vlaneseq
    %v677 = vshrl.u32 %v676, 7
    %v678 = vadd.s32 %v677, 48
    %679 = vset.pattern.permute.xlu0 %v678
    %680 = vperm.xlu0 %679, %v639
    %v681 = vpop.permute.xlu0 %680
    %v682 = vlaneseq
    %v683 = vshrl.u32 %v682, 7
    %v684 = vadd.s32 %v683, 56
    %685 = vset.pattern.permute.xlu0 %v684
    %686 = vperm.xlu0 %685, %v639
    %v687 = vpop.permute.xlu0 %686
    %v688 = vmul.f32 %v130, %v596
    %v689 = vmul.f32 %v131, %v596
    %v690 = vmul.f32 %v132, %v602
    %v691 = vmul.f32 %v133, %v602
    %v692 = vmul.f32 %v134, %v608
    %v693 = vmul.f32 %v135, %v608
    %v694 = vmul.f32 %v136, %v614
    %v695 = vmul.f32 %v137, %v614
    %v696 = vmul.f32 %v138, %v620
    %v697 = vmul.f32 %v139, %v620
    %v698 = vmul.f32 %v140, %v626
    %v699 = vmul.f32 %v141, %v626
    %v700 = vmul.f32 %v142, %v632
    %v701 = vmul.f32 %v143, %v632
    %v702 = vmul.f32 %v144, %v638
    %v703 = vmul.f32 %v145, %v638
    %v704 = vmul.f32 %v146, %v645
    %v705 = vmul.f32 %v147, %v645
    %v706 = vmul.f32 %v148, %v651
    %v707 = vmul.f32 %v149, %v651
    %v708 = vmul.f32 %v150, %v657
    %v709 = vmul.f32 %v151, %v657
    %v710 = vmul.f32 %v152, %v663
    %v711 = vmul.f32 %v153, %v663
    %v712 = vmul.f32 %v154, %v669
    %v713 = vmul.f32 %v155, %v669
    %v714 = vmul.f32 %v156, %v675
    %v715 = vmul.f32 %v157, %v675
    %v716 = vmul.f32 %v158, %v681
    %v717 = vmul.f32 %v159, %v681
    %v718 = vmul.f32 %v160, %v687
    %v719 = vmul.f32 %v161, %v687
    %720 = vst [vmem:[#allocation13] sm:$0xff] %v688
    %721 = vst [vmem:[#allocation13 + $0x8] sm:$0xff] %v689
    %722 = vst [vmem:[#allocation13 + $0x10] sm:$0xff] %v690
    %723 = vst [vmem:[#allocation13 + $0x18] sm:$0xff] %v691
    %724 = vst [vmem:[#allocation13 + $0x20] sm:$0xff] %v692
    %725 = vst [vmem:[#allocation13 + $0x28] sm:$0xff] %v693
    %726 = vst [vmem:[#allocation13 + $0x30] sm:$0xff] %v694
    %727 = vst [vmem:[#allocation13 + $0x38] sm:$0xff] %v695
    %728 = vst [vmem:[#allocation13 + $0x40] sm:$0xff] %v696
    %729 = vst [vmem:[#allocation13 + $0x48] sm:$0xff] %v697
    %730 = vst [vmem:[#allocation13 + $0x50] sm:$0xff] %v698
    %731 = vst [vmem:[#allocation13 + $0x58] sm:$0xff] %v699
    %732 = vst [vmem:[#allocation13 + $0x60] sm:$0xff] %v700
    %733 = vst [vmem:[#allocation13 + $0x68] sm:$0xff] %v701
    %734 = vst [vmem:[#allocation13 + $0x70] sm:$0xff] %v702
    %735 = vst [vmem:[#allocation13 + $0x78] sm:$0xff] %v703
    %736 = vst [vmem:[#allocation13 + $0x80] sm:$0xff] %v704
    %737 = vst [vmem:[#allocation13 + $0x88] sm:$0xff] %v705
    %738 = vst [vmem:[#allocation13 + $0x90] sm:$0xff] %v706
    %739 = vst [vmem:[#allocation13 + $0x98] sm:$0xff] %v707
    %740 = vst [vmem:[#allocation13 + $0xa0] sm:$0xff] %v708
    %741 = vst [vmem:[#allocation13 + $0xa8] sm:$0xff] %v709
    %742 = vst [vmem:[#allocation13 + $0xb0] sm:$0xff] %v710
    %743 = vst [vmem:[#allocation13 + $0xb8] sm:$0xff] %v711
    %744 = vst [vmem:[#allocation13 + $0xc0] sm:$0xff] %v712
    %745 = vst [vmem:[#allocation13 + $0xc8] sm:$0xff] %v713
    %746 = vst [vmem:[#allocation13 + $0xd0] sm:$0xff] %v714
    %747 = vst [vmem:[#allocation13 + $0xd8] sm:$0xff] %v715
    %748 = vst [vmem:[#allocation13 + $0xe0] sm:$0xff] %v716
    %749 = vst [vmem:[#allocation13 + $0xe8] sm:$0xff] %v717
    %750 = vst [vmem:[#allocation13 + $0xf0] sm:$0xff] %v718
    %751 = vst [vmem:[#allocation13 + $0xf8] sm:$0xff] %v719
    %v752 = vperm.slane %v589, 0
    %v753 = vlaneseq
    %v754 = vshrl.u32 %v753, 7
    %756 = vset.pattern.permute.xlu0 %v754
    %757 = vperm.xlu0 %756, %v752
    %v758 = vpop.permute.xlu0 %757
    %v759 = vlaneseq
    %v760 = vshrl.u32 %v759, 7
    %v761 = vadd.s32 %v760, 8
    %762 = vset.pattern.permute.xlu0 %v761
    %763 = vperm.xlu0 %762, %v752
    %v764 = vpop.permute.xlu0 %763
    %v765 = vlaneseq
    %v766 = vshrl.u32 %v765, 7
    %v767 = vadd.s32 %v766, 16
    %768 = vset.pattern.permute.xlu0 %v767
    %769 = vperm.xlu0 %768, %v752
    %v770 = vpop.permute.xlu0 %769
    %v771 = vlaneseq
    %v772 = vshrl.u32 %v771, 7
    %v773 = vadd.s32 %v772, 24
    %774 = vset.pattern.permute.xlu0 %v773
    %775 = vperm.xlu0 %774, %v752
    %v776 = vpop.permute.xlu0 %775
    %v777 = vlaneseq
    %v778 = vshrl.u32 %v777, 7
    %v779 = vadd.s32 %v778, 32
    %780 = vset.pattern.permute.xlu0 %v779
    %781 = vperm.xlu0 %780, %v752
    %v782 = vpop.permute.xlu0 %781
    %v783 = vlaneseq
    %v784 = vshrl.u32 %v783, 7
    %v785 = vadd.s32 %v784, 40
    %786 = vset.pattern.permute.xlu0 %v785
    %787 = vperm.xlu0 %786, %v752
    %v788 = vpop.permute.xlu0 %787
    %v789 = vlaneseq
    %v790 = vshrl.u32 %v789, 7
    %v791 = vadd.s32 %v790, 48
    %792 = vset.pattern.permute.xlu0 %v791
    %793 = vperm.xlu0 %792, %v752
    %v794 = vpop.permute.xlu0 %793
    %v795 = vlaneseq
    %v796 = vshrl.u32 %v795, 7
    %v797 = vadd.s32 %v796, 56
    %798 = vset.pattern.permute.xlu0 %v797
    %799 = vperm.xlu0 %798, %v752
    %v800 = vpop.permute.xlu0 %799
    %v801 = vperm.slane %v589, 1
    %v802 = vlaneseq
    %v803 = vshrl.u32 %v802, 7
    %805 = vset.pattern.permute.xlu0 %v803
    %806 = vperm.xlu0 %805, %v801
    %v807 = vpop.permute.xlu0 %806
    %v808 = vlaneseq
    %v809 = vshrl.u32 %v808, 7
    %v810 = vadd.s32 %v809, 8
    %811 = vset.pattern.permute.xlu0 %v810
    %812 = vperm.xlu0 %811, %v801
    %v813 = vpop.permute.xlu0 %812
    %v814 = vlaneseq
    %v815 = vshrl.u32 %v814, 7
    %v816 = vadd.s32 %v815, 16
    %817 = vset.pattern.permute.xlu0 %v816
    %818 = vperm.xlu0 %817, %v801
    %v819 = vpop.permute.xlu0 %818
    %v820 = vlaneseq
    %v821 = vshrl.u32 %v820, 7
    %v822 = vadd.s32 %v821, 24
    %823 = vset.pattern.permute.xlu0 %v822
    %824 = vperm.xlu0 %823, %v801
    %v825 = vpop.permute.xlu0 %824
    %v826 = vlaneseq
    %v827 = vshrl.u32 %v826, 7
    %v828 = vadd.s32 %v827, 32
    %829 = vset.pattern.permute.xlu0 %v828
    %830 = vperm.xlu0 %829, %v801
    %v831 = vpop.permute.xlu0 %830
    %v832 = vlaneseq
    %v833 = vshrl.u32 %v832, 7
    %v834 = vadd.s32 %v833, 40
    %835 = vset.pattern.permute.xlu0 %v834
    %836 = vperm.xlu0 %835, %v801
    %v837 = vpop.permute.xlu0 %836
    %v838 = vlaneseq
    %v839 = vshrl.u32 %v838, 7
    %v840 = vadd.s32 %v839, 48
    %841 = vset.pattern.permute.xlu0 %v840
    %842 = vperm.xlu0 %841, %v801
    %v843 = vpop.permute.xlu0 %842
    %v844 = vlaneseq
    %v845 = vshrl.u32 %v844, 7
    %v846 = vadd.s32 %v845, 56
    %847 = vset.pattern.permute.xlu0 %v846
    %848 = vperm.xlu0 %847, %v801
    %v849 = vpop.permute.xlu0 %848
    %v850 = vmul.f32 %v162, %v758
    %v851 = vmul.f32 %v163, %v758
    %v852 = vmul.f32 %v164, %v764
    %v853 = vmul.f32 %v165, %v764
    %v854 = vmul.f32 %v166, %v770
    %v855 = vmul.f32 %v167, %v770
    %v856 = vmul.f32 %v168, %v776
    %v857 = vmul.f32 %v169, %v776
    %v858 = vmul.f32 %v170, %v782
    %v859 = vmul.f32 %v171, %v782
    %v860 = vmul.f32 %v172, %v788
    %v861 = vmul.f32 %v173, %v788
    %v862 = vmul.f32 %v174, %v794
    %v863 = vmul.f32 %v175, %v794
    %v864 = vmul.f32 %v176, %v800
    %v865 = vmul.f32 %v177, %v800
    %v866 = vmul.f32 %v178, %v807
    %v867 = vmul.f32 %v179, %v807
    %v868 = vmul.f32 %v180, %v813
    %v869 = vmul.f32 %v181, %v813
    %v870 = vmul.f32 %v182, %v819
    %v871 = vmul.f32 %v183, %v819
    %v872 = vmul.f32 %v184, %v825
    %v873 = vmul.f32 %v185, %v825
    %v874 = vmul.f32 %v186, %v831
    %v875 = vmul.f32 %v187, %v831
    %v876 = vmul.f32 %v188, %v837
    %v877 = vmul.f32 %v189, %v837
    %v878 = vmul.f32 %v190, %v843
    %v879 = vmul.f32 %v191, %v843
    %v880 = vmul.f32 %v192, %v849
    %v881 = vmul.f32 %v193, %v849
    %882 = vst [vmem:[#allocation14] sm:$0xff] %v850
    %883 = vst.msk [vmem:[#allocation14 + $0x8] sm:$0xff] %vm242, %v851
    %884 = vst [vmem:[#allocation14 + $0x10] sm:$0xff] %v852
    %885 = vst.msk [vmem:[#allocation14 + $0x18] sm:$0xff] %vm242, %v853
    %886 = vst [vmem:[#allocation14 + $0x20] sm:$0xff] %v854
    %887 = vst.msk [vmem:[#allocation14 + $0x28] sm:$0xff] %vm242, %v855
    %888 = vst [vmem:[#allocation14 + $0x30] sm:$0xff] %v856
    %889 = vst.msk [vmem:[#allocation14 + $0x38] sm:$0xff] %vm242, %v857
    %890 = vst [vmem:[#allocation14 + $0x40] sm:$0xff] %v858
    %891 = vst.msk [vmem:[#allocation14 + $0x48] sm:$0xff] %vm242, %v859
    %892 = vst [vmem:[#allocation14 + $0x50] sm:$0xff] %v860
    %893 = vst.msk [vmem:[#allocation14 + $0x58] sm:$0xff] %vm242, %v861
    %894 = vst [vmem:[#allocation14 + $0x60] sm:$0xff] %v862
    %895 = vst.msk [vmem:[#allocation14 + $0x68] sm:$0xff] %vm242, %v863
    %896 = vst [vmem:[#allocation14 + $0x70] sm:$0xff] %v864
    %897 = vst.msk [vmem:[#allocation14 + $0x78] sm:$0xff] %vm242, %v865
    %898 = vst [vmem:[#allocation14 + $0x80] sm:$0xff] %v866
    %899 = vst.msk [vmem:[#allocation14 + $0x88] sm:$0xff] %vm242, %v867
    %900 = vst [vmem:[#allocation14 + $0x90] sm:$0xff] %v868
    %901 = vst.msk [vmem:[#allocation14 + $0x98] sm:$0xff] %vm242, %v869
    %902 = vst [vmem:[#allocation14 + $0xa0] sm:$0xff] %v870
    %903 = vst.msk [vmem:[#allocation14 + $0xa8] sm:$0xff] %vm242, %v871
    %904 = vst [vmem:[#allocation14 + $0xb0] sm:$0xff] %v872
    %905 = vst.msk [vmem:[#allocation14 + $0xb8] sm:$0xff] %vm242, %v873
    %906 = vst [vmem:[#allocation14 + $0xc0] sm:$0xff] %v874
    %907 = vst.msk [vmem:[#allocation14 + $0xc8] sm:$0xff] %vm242, %v875
    %908 = vst [vmem:[#allocation14 + $0xd0] sm:$0xff] %v876
    %909 = vst.msk [vmem:[#allocation14 + $0xd8] sm:$0xff] %vm242, %v877
    %910 = vst [vmem:[#allocation14 + $0xe0] sm:$0xff] %v878
    %911 = vst.msk [vmem:[#allocation14 + $0xe8] sm:$0xff] %vm242, %v879
    %912 = vst [vmem:[#allocation14 + $0xf0] sm:$0xff] %v880
    %913 = vst.msk [vmem:[#allocation14 + $0xf8] sm:$0xff] %vm242, %v881
    // Predicated region
    $region62: #{tpu_custom_call.1} parent=1 // pred_check
      _
    $region63: #{tpu_custom_call.1} parent=1 // pred_check_branch
      %915 = sbr.rel (0) target = $region65
    $region64: #{tpu_custom_call.1} parent=1 // pred_region
      %917 = vsyncadd [#allocation4], 0
      %s918 = sshll.u32 [#allocation13], 4
      %s919 = int_to_ptr.vmem [resolvable:$true] %s918
      %s920 = sshll.u32 %s9, 4
      %s921 = int_to_ptr.hbm [resolvable:$true] %s920
      %926 = dma.vmem_to_hbm [thread:$0]  %s919, 4096, %s921, [#allocation4], 256, 256, 16
    $region65: #{tpu_custom_call.1} parent=1 // pred_fallthru
      _
    // Predicated region
    $region66: #{tpu_custom_call.1} parent=1 // pred_check
      _
    $region67: #{tpu_custom_call.1} parent=1 // pred_check_branch
      %928 = sbr.rel (0) target = $region69
    $region68: #{tpu_custom_call.1} parent=1 // pred_region
      %930 = vsyncadd [#allocation15], 0
      %s931 = sshll.u32 [#allocation14], 4
      %s932 = int_to_ptr.vmem [resolvable:$true] %s931
      %s933 = sshll.u32 %s10, 4
      %s934 = int_to_ptr.hbm [resolvable:$true] %s933
      %939 = dma.vmem_to_hbm [thread:$0]  %s932, 4096, %s934, [#allocation15], 256, 256, 16
    $region69: #{tpu_custom_call.1} parent=1 // pred_fallthru
      _
    // Predicated region
    $region70: #{tpu_custom_call.1} parent=1 // pred_check
      _
    $region71: #{tpu_custom_call.1} parent=1 // pred_check_branch
      %941 = sbr.rel (0) target = $region73
    $region72: #{tpu_custom_call.1} parent=1 // pred_region
      %943 = dma.done [#allocation4], 4096
    $region73: #{tpu_custom_call.1} parent=1 // pred_fallthru
      _
    // Predicated region
    $region74: #{tpu_custom_call.1} parent=1 // pred_check
      _
    $region75: #{tpu_custom_call.1} parent=1 // pred_check_branch
      %945 = sbr.rel (0) target = $region77
    $region76: #{tpu_custom_call.1} parent=1 // pred_region
      %947 = dma.done [#allocation15], 4096
    $region77: #{tpu_custom_call.1} parent=1 // pred_fallthru
      _
    %948 = vsyncpa [#allocation3], 1
    %949 = vsyncpa [#allocation6], 1
    %950 = vsyncpa [#allocation9], 1
    %951 = vsyncpa [#allocation12], 1
    %952 = vsyncpa [#allocation4], 1
    %953 = vsyncpa [#allocation15], 1

</llo_original>
